<compile_context>
chip_gen: v6e
topology: v6e:2x2x1
jax: 0.10.0
libtpu: 0.0.40
codegen_flags: <defaults>
</compile_context>

<pallas_src>
import jax
import jax.numpy as jnp
from jax.experimental import pallas as pl
from jax.experimental.pallas import tpu as pltpu


def _mil_bce_kernel(sn_ref, sa_ref, nl_ref, al_ref, out_ref):
    # sn/sa/nl/al: (1, B) f32 in VMEM; out: (1, 1) f32 in SMEM.
    sn = sn_ref[...]
    sa = sa_ref[...]
    nl = nl_ref[...]
    al = al_ref[...]

    def _bce_sum(s, y):
        # torch.nn.BCELoss clamps each log term at -100 before weighting.
        log_s = jnp.maximum(jnp.log(s), -100.0)
        log_1ms = jnp.maximum(jnp.log(1.0 - s), -100.0)
        return jnp.sum(-(y * log_s + (1.0 - y) * log_1ms))

    total = _bce_sum(sn, nl) + _bce_sum(sa, al)
    n = sn.shape[1] + sa.shape[1]            # static: 2*B
    out_ref[0, 0] = total * jnp.float32(1.0 / n)


def mil_loss(score_normal, score_abnormal, nlabel, alabel):
    """Pallas equivalent of MIL_loss.forward.

    score_normal:   (B, 1) f32 in (0, 1)
    score_abnormal: (B, 1) f32 in (0, 1)
    nlabel:         (B,)   f32
    alabel:         (B,)   f32
    returns scalar f32 loss (mean BCE over the 2*B concatenated scores)
    """
    B = score_normal.shape[0]
    # Metadata-only reshapes (no concat / no extra HBM round trips); the logical
    # concatenation happens inside the kernel.
    sn = score_normal.reshape(1, B).astype(jnp.float32)
    sa = score_abnormal.reshape(1, B).astype(jnp.float32)
    nl = nlabel.reshape(1, B).astype(jnp.float32)
    al = alabel.reshape(1, B).astype(jnp.float32)

    vmem = pl.BlockSpec(memory_space=pltpu.MemorySpace.VMEM)
    out = pl.pallas_call(
        _mil_bce_kernel,
        out_shape=jax.ShapeDtypeStruct((1, 1), jnp.float32),
        in_specs=[vmem, vmem, vmem, vmem],
        out_specs=pl.BlockSpec(memory_space=pltpu.MemorySpace.SMEM),
    )(sn, sa, nl, al)
    return out[0, 0]


if __name__ == "__main__":
    key = jax.random.PRNGKey(0)
    B = 8  # bags per class

    k1, k2 = jax.random.split(key)
    # scores must lie in (0, 1) for BCE -> squash with sigmoid (done upstream of
    # the loss module in the original training code).
    score_normal = jax.nn.sigmoid(jax.random.normal(k1, (B, 1), dtype=jnp.float32))
    score_abnormal = jax.nn.sigmoid(jax.random.normal(k2, (B, 1), dtype=jnp.float32))
    nlabel = jnp.zeros((B,), dtype=jnp.float32)
    alabel = jnp.ones((B,), dtype=jnp.float32)

    loss = mil_loss(score_normal, score_abnormal, nlabel, alabel)
    jax.block_until_ready(loss)

    # Reference check (pure JAX, identical to torch BCELoss with -100 clamp).
    s = jnp.concatenate([score_normal, score_abnormal], 0).squeeze()
    y = jnp.concatenate([nlabel, alabel], 0)
    ref = -jnp.mean(y * jnp.maximum(jnp.log(s), -100.0)
                    + (1.0 - y) * jnp.maximum(jnp.log(1.0 - s), -100.0))
    assert jnp.allclose(loss, ref, rtol=1e-5, atol=1e-6), (loss, ref)

    print("KERNEL_OK")
</pallas_src>

<mosaic_0001>
module attributes {stable_mosaic.version = 11 : i64} {
  func.func @_mil_bce_kernel(%arg0: memref<1x8xf32, #tpu.memory_space<vmem>>, %arg1: memref<1x8xf32, #tpu.memory_space<vmem>>, %arg2: memref<1x8xf32, #tpu.memory_space<vmem>>, %arg3: memref<1x8xf32, #tpu.memory_space<vmem>>, %arg4: memref<1x1xf32, #tpu.memory_space<smem>>) attributes {dimension_semantics = [], scalar_prefetch = 0 : i64, scratch_operands = 0 : i64, tpu.core_type = #tpu.core_type<tc>} {
    %c0 = arith.constant 0 : index
    %c0_0 = arith.constant 0 : index
    %0 = vector.load %arg0[%c0, %c0_0] : memref<1x8xf32, #tpu.memory_space<vmem>>, vector<1x8xf32>
    %c0_1 = arith.constant 0 : index
    %c0_2 = arith.constant 0 : index
    %1 = vector.load %arg1[%c0_1, %c0_2] : memref<1x8xf32, #tpu.memory_space<vmem>>, vector<1x8xf32>
    %c0_3 = arith.constant 0 : index
    %c0_4 = arith.constant 0 : index
    %2 = vector.load %arg2[%c0_3, %c0_4] : memref<1x8xf32, #tpu.memory_space<vmem>>, vector<1x8xf32>
    %c0_5 = arith.constant 0 : index
    %c0_6 = arith.constant 0 : index
    %3 = vector.load %arg3[%c0_5, %c0_6] : memref<1x8xf32, #tpu.memory_space<vmem>>, vector<1x8xf32>
    %4 = math.log %0 : vector<1x8xf32>
    %cst = arith.constant -1.000000e+02 : f32
    %5 = vector.broadcast %cst : f32 to vector<1x8xf32>
    %6 = arith.maximumf %4, %5 : vector<1x8xf32>
    %cst_7 = arith.constant 1.000000e+00 : f32
    %7 = vector.broadcast %cst_7 : f32 to vector<1x8xf32>
    %8 = arith.subf %7, %0 : vector<1x8xf32>
    %9 = math.log %8 : vector<1x8xf32>
    %cst_8 = arith.constant -1.000000e+02 : f32
    %10 = vector.broadcast %cst_8 : f32 to vector<1x8xf32>
    %11 = arith.maximumf %9, %10 : vector<1x8xf32>
    %12 = arith.mulf %2, %6 : vector<1x8xf32>
    %cst_9 = arith.constant 1.000000e+00 : f32
    %13 = vector.broadcast %cst_9 : f32 to vector<1x8xf32>
    %14 = arith.subf %13, %2 : vector<1x8xf32>
    %15 = arith.mulf %14, %11 : vector<1x8xf32>
    %16 = arith.addf %12, %15 : vector<1x8xf32>
    %cst_10 = arith.constant 0.000000e+00 : f32
    %17 = vector.broadcast %cst_10 : f32 to vector<1x8xf32>
    %18 = arith.subf %17, %16 : vector<1x8xf32>
    %19 = vector.shape_cast %18 : vector<1x8xf32> to vector<1x1x8xf32>
    %cst_11 = arith.constant dense<0.000000e+00> : vector<1xf32>
    %20 = vector.multi_reduction <add>, %19, %cst_11 [1, 2] : vector<1x1x8xf32> to vector<1xf32>
    %21 = vector.shape_cast %20 : vector<1xf32> to vector<1x1x1xf32>
    %22 = vector.extract %21[0, 0, 0] : f32 from vector<1x1x1xf32>
    %23 = math.log %1 : vector<1x8xf32>
    %cst_12 = arith.constant -1.000000e+02 : f32
    %24 = vector.broadcast %cst_12 : f32 to vector<1x8xf32>
    %25 = arith.maximumf %23, %24 : vector<1x8xf32>
    %cst_13 = arith.constant 1.000000e+00 : f32
    %26 = vector.broadcast %cst_13 : f32 to vector<1x8xf32>
    %27 = arith.subf %26, %1 : vector<1x8xf32>
    %28 = math.log %27 : vector<1x8xf32>
    %cst_14 = arith.constant -1.000000e+02 : f32
    %29 = vector.broadcast %cst_14 : f32 to vector<1x8xf32>
    %30 = arith.maximumf %28, %29 : vector<1x8xf32>
    %31 = arith.mulf %3, %25 : vector<1x8xf32>
    %cst_15 = arith.constant 1.000000e+00 : f32
    %32 = vector.broadcast %cst_15 : f32 to vector<1x8xf32>
    %33 = arith.subf %32, %3 : vector<1x8xf32>
    %34 = arith.mulf %33, %30 : vector<1x8xf32>
    %35 = arith.addf %31, %34 : vector<1x8xf32>
    %cst_16 = arith.constant 0.000000e+00 : f32
    %36 = vector.broadcast %cst_16 : f32 to vector<1x8xf32>
    %37 = arith.subf %36, %35 : vector<1x8xf32>
    %38 = vector.shape_cast %37 : vector<1x8xf32> to vector<1x1x8xf32>
    %cst_17 = arith.constant dense<0.000000e+00> : vector<1xf32>
    %39 = vector.multi_reduction <add>, %38, %cst_17 [1, 2] : vector<1x1x8xf32> to vector<1xf32>
    %40 = vector.shape_cast %39 : vector<1xf32> to vector<1x1x1xf32>
    %41 = vector.extract %40[0, 0, 0] : f32 from vector<1x1x1xf32>
    %42 = arith.addf %22, %41 : f32
    %cst_18 = arith.constant 6.250000e-02 : f32
    %43 = arith.mulf %42, %cst_18 : f32
    %c0_19 = arith.constant 0 : index
    %c0_20 = arith.constant 0 : index
    %44 = memref.load %arg4[%c0_19, %c0_20] : memref<1x1xf32, #tpu.memory_space<smem>>
    memref.store %43, %arg4[%c0_19, %c0_20] : memref<1x1xf32, #tpu.memory_space<smem>>
    return
  }
}

</mosaic_0001>

<llo_original>
// kernel: tpu_custom_call.1
$region0: #{tpu_custom_call.1}
  #allocation0 [shape = 'u32[]', space=smem, size = 0x4, offset = 0x4, fixed_abs, tag = 'smem constant byte address 0x4 - core index']
  #allocation1 [shape = 'u32[144,128]{1,0:T(1,128)}', space=vmem, size = 0x12000, scoped, tag = 'internal scratch']
  %s0 = inlined_call_operand.hbm [shape: f32[1,8], index: 0, kind: input, shape index: {}]
  %s1 = inlined_call_operand.vmem [shape: f32[1,8], index: 1, kind: input, shape index: {}]
  %s2 = inlined_call_operand.vmem [shape: f32[1,8], index: 2, kind: input, shape index: {}]
  %s3 = inlined_call_operand.vmem [shape: f32[1,8], index: 3, kind: input, shape index: {}]
  %s4 = inlined_call_operand.hbm [shape: f32[1,1], index: 4, kind: output, shape index: {}]
  %s5 = sld [smem:[#allocation0]]
  $region30: #{tpu_custom_call.1} parent=0
    _
  %s7 = ssub.s32 1, %s5
  %s8 = scalar_select 0, %s7, %s5
  $region1: #{tpu_custom_call.1} parent=0
    #allocation2 [shape = 'u8[512]{0}', space=vmem, size = 0x400, scoped, tag = 'input window, operand 0, single buffered']
    #allocation3 [shape = 's32[1]{0}', space=sflag, size = 0x4, scoped, tag = 'scoped memory for tpu_custom_call.1']
    #allocation4 [shape = 's32[1]{0}', space=sflag, size = 0x4, scoped, tag = 'scoped memory for tpu_custom_call.1']
    #allocation5 [shape = 'u8[512]{0}', space=smem, size = 0x200, scoped, tag = 'output window, operand 0, single buffered']
    %9 = vsyncpa [#allocation3], 0
    %10 = vsyncpa [#allocation4], 0
    // Predicated region
    $region2: #{tpu_custom_call.1} parent=1 // pred_check
      _
    $region3: #{tpu_custom_call.1} parent=1 // pred_check_branch
      %12 = sbr.rel (0) target = $region5
    $region4: #{tpu_custom_call.1} parent=1 // pred_region
      %s14 = ssub.s32 16, 16
      %15 = vsyncadd [#allocation3], %s14
      %s17 = sshll.u32 [#allocation2], 4
      %s18 = int_to_ptr.vmem [resolvable:$true] %s17
      %20 = dma.hbm_to_vmem [thread:$0]  %s0, 16, %s18, [#allocation3]
    $region5: #{tpu_custom_call.1} parent=1 // pred_fallthru
      _
    // Predicated region
    $region6: #{tpu_custom_call.1} parent=1 // pred_check
      _
    $region7: #{tpu_custom_call.1} parent=1 // pred_check_branch
      %22 = sbr.rel (0) target = $region9
    $region8: #{tpu_custom_call.1} parent=1 // pred_region
      _
    $region9: #{tpu_custom_call.1} parent=1 // pred_fallthru
      _
    // Predicated region
    $region10: #{tpu_custom_call.1} parent=1 // pred_check
      _
    $region11: #{tpu_custom_call.1} parent=1 // pred_check_branch
      %24 = sbr.rel (0) target = $region13
    $region12: #{tpu_custom_call.1} parent=1 // pred_region
      _
    $region13: #{tpu_custom_call.1} parent=1 // pred_fallthru
      _
    // Predicated region
    $region14: #{tpu_custom_call.1} parent=1 // pred_check
      _
    $region15: #{tpu_custom_call.1} parent=1 // pred_check_branch
      %26 = sbr.rel (0) target = $region17
    $region16: #{tpu_custom_call.1} parent=1 // pred_region
      _
    $region17: #{tpu_custom_call.1} parent=1 // pred_fallthru
      _
    // Predicated region
    $region18: #{tpu_custom_call.1} parent=1 // pred_check
      _
    $region19: #{tpu_custom_call.1} parent=1 // pred_check_branch
      %28 = sbr.rel (0) target = $region21
    $region20: #{tpu_custom_call.1} parent=1 // pred_region
      %29 = dma.done [#allocation3], 16
    $region21: #{tpu_custom_call.1} parent=1 // pred_fallthru
      _
    %v30 = vld [vmem:[#allocation2] sm:$0x1]
    %v31 = vld [vmem:[%s1] sm:$0x1]
    %v32 = vld [vmem:[%s2] sm:$0x1]
    %v33 = vld [vmem:[%s3] sm:$0x1]
    %v34 = vlog2.pop %v30
    %v35 = vmul.f32 %v34, 0.6931472
    %v36 = vmax.f32 %v35, -100.0
    %v37 = vsub.f32 1.0, %v30
    %v38 = vlog2.pop %v37
    %v39 = vmul.f32 %v38, 0.6931472
    %v40 = vmax.f32 %v39, -100.0
    %v41 = vmul.f32 %v32, %v36
    %v42 = vsub.f32 1.0, %v32
    %v43 = vmul.f32 %v42, %v40
    %v44 = vadd.f32 %v41, %v43
    %v45 = vsub.f32 0.0, %v44
    %vm46 = vcmask 57344
    %v47 = vsel %vm46, %v45, 0.0
    %48 = vadd.xlane.f32.xlu0 %v47
    %v49 = vpop.xlane.xlu0 %48
    %v50 = vrot.slane %v49, 4
    %v51 = vadd.f32 %v49, %v50
    %v52 = vrot.slane %v51, 2
    %v53 = vadd.f32 %v51, %v52
    %v54 = vrot.slane %v53, 1
    %v55 = vadd.f32 %v53, %v54
    %s56 = vtos %v55
    %v57 = vlog2.pop %v31
    %v58 = vmul.f32 %v57, 0.6931472
    %v59 = vmax.f32 %v58, -100.0
    %v60 = vsub.f32 1.0, %v31
    %v61 = vlog2.pop %v60
    %v62 = vmul.f32 %v61, 0.6931472
    %v63 = vmax.f32 %v62, -100.0
    %v64 = vmul.f32 %v33, %v59
    %v65 = vsub.f32 1.0, %v33
    %v66 = vmul.f32 %v65, %v63
    %v67 = vadd.f32 %v64, %v66
    %v68 = vsub.f32 0.0, %v67
    %v69 = vsel %vm46, %v68, 0.0
    %70 = vadd.xlane.f32.xlu0 %v69
    %v71 = vpop.xlane.xlu0 %70
    %v72 = vrot.slane %v71, 4
    %v73 = vadd.f32 %v71, %v72
    %v74 = vrot.slane %v73, 2
    %v75 = vadd.f32 %v73, %v74
    %v76 = vrot.slane %v75, 1
    %v77 = vadd.f32 %v75, %v76
    %s78 = vtos %v77
    %s79 = sadd.f32 %s56, %s78
    %s80 = smul.f32 %s79, 0.0625
    %s81 = scalar_lea.smem [#allocation5], 0
    %82 = sst [smem:[%s81]] %s80
    // Predicated region
    $region22: #{tpu_custom_call.1} parent=1 // pred_check
      _
    $region23: #{tpu_custom_call.1} parent=1 // pred_check_branch
      %84 = sbr.rel (0) target = $region25
    $region24: #{tpu_custom_call.1} parent=1 // pred_region
      %s86 = ssub.s32 16, 16
      %87 = vsyncadd [#allocation4], %s86
      %90 = dma.smem_to_hbm [#allocation5], 16, %s4, [#allocation4]
    $region25: #{tpu_custom_call.1} parent=1 // pred_fallthru
      _
    // Predicated region
    $region26: #{tpu_custom_call.1} parent=1 // pred_check
      _
    $region27: #{tpu_custom_call.1} parent=1 // pred_check_branch
      %92 = sbr.rel (0) target = $region29
    $region28: #{tpu_custom_call.1} parent=1 // pred_region
      %93 = dma.done [#allocation4], 16
    $region29: #{tpu_custom_call.1} parent=1 // pred_fallthru
      _
    %94 = sfence
    %95 = vsyncpa [#allocation3], 1
    %96 = vsyncpa [#allocation4], 1

</llo_original>
